<compile_context>
chip_gen: v6e
topology: v6e:2x2x1
jax: 0.10.0
libtpu: 0.0.40
codegen_flags: <defaults>
</compile_context>

<pallas_src>
import jax
import jax.numpy as jnp
from jax.experimental import pallas as pl
from jax.experimental.pallas import tpu as pltpu


_EPS = 1e-12
_LANE = 128
_SUBLANE = 8
_MXU_M = 256   # MXU-friendly M tile multiple (v6e/v7x 2x256x256; also a mult. of 128)


def _round_up(n, m):
    return ((n + m - 1) // m) * m


# -----------------------------------------------------------------------------
# Kernel
# -----------------------------------------------------------------------------
def _glu_fused(h, w_ref, b_ref):
    """One GLU layer with fused [sigmoid || gate] bf16 weights, f32 accumulation."""
    y = jnp.dot(h.astype(jnp.bfloat16), w_ref[...],
                preferred_element_type=jnp.float32)
    y = y + b_ref[...]                       # f32 bias, f32 epilogue
    half = w_ref.shape[1] // 2               # static, multiple of 128 (lane-aligned)
    s = jax.nn.sigmoid(y[:, :half])
    g = jnp.maximum(y[:, half:], 0.0)
    return s * g


def transform_kernel(
    x_ref,
    w1_ref, b1_ref,
    w2_ref, b2_ref,
    w3_ref, b3_ref,
    o_ref,
):
    h = x_ref[...].astype(jnp.float32)
    h = _glu_fused(h, w1_ref, b1_ref)
    h = _glu_fused(h, w2_ref, b2_ref)
    h = _glu_fused(h, w3_ref, b3_ref)

    # F.normalize(x, dim=1): x / max(||x||, eps) == x * rsqrt(max(||x||^2, eps^2)).
    # Padded feature lanes of h are exactly 0 (zero weights/bias -> sigmoid(0)*relu(0)=0),
    # so they do not pollute the norm.  rsqrt runs on the EUP slot.
    sq = jnp.sum(h * h, axis=-1, keepdims=True)
    inv = jax.lax.rsqrt(jnp.maximum(sq, _EPS * _EPS))
    out = h * inv
    o_ref[...] = out[:, : o_ref.shape[1]].astype(o_ref.dtype)


# -----------------------------------------------------------------------------
# Parameter preparation (run ONCE per parameter set, outside the forward)
# -----------------------------------------------------------------------------
def _fuse_pad(ws, bs, wg, bg, k_p, cout_p):
    """Concatenate sigmoid/gate weights along C_out, zero-pad, cast weights to bf16."""
    cin, cout = ws.shape
    w = jnp.zeros((k_p, 2 * cout_p), jnp.float32)
    w = w.at[:cin, :cout].set(ws.astype(jnp.float32))
    w = w.at[:cin, cout_p:cout_p + cout].set(wg.astype(jnp.float32))
    b = jnp.zeros((1, 2 * cout_p), jnp.float32)
    b = b.at[:, :cout].set(jnp.reshape(bs, (1, -1)).astype(jnp.float32))
    b = b.at[:, cout_p:cout_p + cout].set(jnp.reshape(bg, (1, -1)).astype(jnp.float32))
    return w.astype(jnp.bfloat16), b        # bf16 weights, f32 biases


def prepare_params(params):
    """Fuse + pad + bf16-cast the GLU weights once; reuse across forward calls."""
    c1 = params["w1s"].shape[0]
    c2 = params["w3s"].shape[1]
    c1p = _round_up(c1, _LANE)
    c2p = _round_up(c2, _LANE)
    # W1 keeps K = c1 (x is passed unpadded in the feature dim); W2/W3 take K = c1p.
    w1, b1 = _fuse_pad(params["w1s"], params["b1s"], params["w1g"], params["b1g"], c1, c1p)
    w2, b2 = _fuse_pad(params["w2s"], params["b2s"], params["w2g"], params["b2g"], c1p, c1p)
    w3, b3 = _fuse_pad(params["w3s"], params["b3s"], params["w3g"], params["b3g"], c1p, c2p)
    return {"c1": c1, "c2": c2, "c1p": c1p, "c2p": c2p,
            "weights": (w1, b1, w2, b2, w3, b3)}


# -----------------------------------------------------------------------------
# VMEM budget / tile picking
# -----------------------------------------------------------------------------
def _vmem_budget():
    """Generation-aware scoped VMEM limit + planning budget."""
    try:
        cap = int(pltpu.get_tpu_info().vmem_capacity_bytes)
    except Exception:
        cap = 64 << 20                       # conservative (v7x per-TC physical)
    limit = min((cap * 3) // 4, 96 << 20)    # 96 MiB on 128 MiB chips, 48 MiB on v7x
    budget = (limit * 7) // 10               # headroom for compiler scratch
    return limit, budget


def _pick_tile_b(B, c1, c1p, c2, c2p, weight_bytes, budget_bytes):
    """Largest batch tile that fits the VMEM budget, MXU-rounded, >=2 grid steps."""
    # Per-row VMEM bytes: double-buffered x/out tiles + f32 y/h intermediates per
    # layer + bf16 LHS casts.  Generous so the compiler's scratch fits too.
    per_row = 4 * 2 * (c1 + c2)                                   # pipelined in/out
    per_row += 4 * ((2 * c1p + c1p) * 2 + (2 * c2p + c2p))        # f32 intermediates
    per_row += 2 * (c1 + 2 * c1p)                                 # bf16 matmul LHS
    avail = budget_bytes - weight_bytes
    max_rows = max(avail // per_row, _SUBLANE) if avail > 0 else _SUBLANE

    tile_b = min(_round_up(B, _SUBLANE), max_rows)
    # Keep >=2 grid steps when the batch allows: overlaps DMA with compute and lets
    # the single "parallel" grid axis shard across both TensorCores on v7x.
    if B > _SUBLANE:
        tile_b = min(tile_b, _round_up(pl.cdiv(B, 2), _SUBLANE))
    # MXU-friendly M once large enough; otherwise just keep the f32 sublane multiple.
    if tile_b >= _MXU_M:
        tile_b = (tile_b // _MXU_M) * _MXU_M
    else:
        tile_b = _round_up(tile_b, _SUBLANE)
    return int(max(tile_b, _SUBLANE))


# -----------------------------------------------------------------------------
# Forward wrapper
# -----------------------------------------------------------------------------
def transform_forward(x, prep, *, tile_b=None):
    """x: (B, c1) float32.  prep: output of prepare_params()."""
    B, c1 = x.shape
    assert c1 == prep["c1"], "input feature width must match params"
    c2, c1p, c2p = prep["c2"], prep["c1p"], prep["c2p"]
    w1, b1, w2, b2, w3, b3 = prep["weights"]
    weight_args = [w1, b1, w2, b2, w3, b3]
    weight_bytes = sum(int(a.size) * a.dtype.itemsize for a in weight_args)

    vmem_limit, budget = _vmem_budget()
    # TODO(synk): for very large feature dims (weight_bytes > ~budget/3, esp. on
    # v7x's 64 MiB VMEM) stream the fused C_out / K of the weights with an extra
    # grid axis or pltpu.emit_pipeline instead of keeping them fully resident.
    if tile_b is None:
        tile_b = _pick_tile_b(B, c1, c1p, c2, c2p, weight_bytes, budget)
    assert tile_b % _SUBLANE == 0, "tile_b must be a multiple of 8 (f32 sublane)"

    B_pad = _round_up(B, tile_b)
    x_in = x.astype(jnp.float32)
    if B_pad != B:
        # Pad only the batch dim; feature dim stays at its true width c1.
        x_in = jnp.zeros((B_pad, c1), jnp.float32).at[:B].set(x_in)

    def run(resident_weights):
        if resident_weights:
            # Constant block index -> single-buffered, resident in VMEM across steps.
            def wspec(arr):
                return pl.BlockSpec(arr.shape, lambda i: (0, 0),
                                    pipeline_mode=pl.Buffered(1))
        else:
            def wspec(arr):
                return pl.BlockSpec(arr.shape, lambda i: (0, 0))
        return pl.pallas_call(
            transform_kernel,
            out_shape=jax.ShapeDtypeStruct((B_pad, c2), jnp.float32),
            grid_spec=pltpu.PrefetchScalarGridSpec(
                num_scalar_prefetch=0,
                grid=(B_pad // tile_b,),
                in_specs=[pl.BlockSpec((tile_b, c1), lambda i: (i, 0))]
                + [wspec(w) for w in weight_args],
                out_specs=pl.BlockSpec((tile_b, c2), lambda i: (i, 0)),
            ),
            compiler_params=pltpu.CompilerParams(
                dimension_semantics=("parallel",),
                vmem_limit_bytes=vmem_limit,
            ),
        )(x_in, *weight_args)

    try:
        out = run(resident_weights=True)
    except Exception:
        # Fallback for jax versions without BlockSpec.pipeline_mode support.
        out = run(resident_weights=False)

    return out if B_pad == B else out[:B]


# -----------------------------------------------------------------------------
# Params + pure-JAX reference
# -----------------------------------------------------------------------------
def init_params(key, c1, c2):
    """Deterministic synthetic params. Weights stored (c_in, c_out), biases (1, c_out)."""
    keys = jax.random.split(key, 12)

    def w(k, ci, co):
        return (jax.random.normal(k, (ci, co), jnp.float32) * (1.0 / jnp.sqrt(ci))).astype(jnp.float32)

    def b(k, co):
        return (jax.random.normal(k, (1, co), jnp.float32) * 0.01).astype(jnp.float32)

    return {
        "w1s": w(keys[0], c1, c1), "b1s": b(keys[1], c1),
        "w1g": w(keys[2], c1, c1), "b1g": b(keys[3], c1),
        "w2s": w(keys[4], c1, c1), "b2s": b(keys[5], c1),
        "w2g": w(keys[6], c1, c1), "b2g": b(keys[7], c1),
        "w3s": w(keys[8], c1, c2), "b3s": b(keys[9], c2),
        "w3g": w(keys[10], c1, c2), "b3g": b(keys[11], c2),
    }


def transform_ref(x, p):
    """Pure-JAX f32 reference of the PyTorch forward, for correctness checking."""
    def glu(h, ws, bs, wg, bg):
        return jax.nn.sigmoid(h @ ws + bs) * jnp.maximum(h @ wg + bg, 0.0)

    h = glu(x, p["w1s"], p["b1s"], p["w1g"], p["b1g"])
    h = glu(h, p["w2s"], p["b2s"], p["w2g"], p["b2g"])
    h = glu(h, p["w3s"], p["b3s"], p["w3g"], p["b3g"])
    nrm = jnp.sqrt(jnp.sum(h * h, axis=1, keepdims=True))
    return h / jnp.maximum(nrm, _EPS)


if __name__ == "__main__":
    key = jax.random.PRNGKey(0)
    kx, kp = jax.random.split(key)

    B, C1, C2 = 8, 32, 16  # small shapes consistent with Linear(c1->c1->c1->c2)
    x = jax.random.normal(kx, (B, C1), jnp.float32)
    params = init_params(kp, C1, C2)

    prep = prepare_params(params)          # fuse/pad/bf16-cast weights once
    out = transform_forward(x, prep)
    out = jax.block_until_ready(out)

    ref = transform_ref(x, params)
    assert out.shape == (B, C2)
    # bf16 MXU inputs with f32 accumulation -> relaxed tolerance vs the f32 reference.
    assert jnp.allclose(out, ref, atol=2e-2, rtol=2e-2), "mismatch vs reference"

    print("KERNEL_OK")
</pallas_src>

<mosaic_0001>
module attributes {stable_mosaic.version = 11 : i64} {
  func.func @transform_kernel(%arg0: i32, %arg1: memref<8x32xf32, #tpu.memory_space<vmem>>, %arg2: memref<32x256xbf16, #tpu.memory_space<vmem>>, %arg3: memref<1x256xf32, #tpu.memory_space<vmem>>, %arg4: memref<128x256xbf16, #tpu.memory_space<vmem>>, %arg5: memref<1x256xf32, #tpu.memory_space<vmem>>, %arg6: memref<128x256xbf16, #tpu.memory_space<vmem>>, %arg7: memref<1x256xf32, #tpu.memory_space<vmem>>, %arg8: memref<8x16xf32, #tpu.memory_space<vmem>>) attributes {dimension_semantics = [#tpu.dimension_semantics<parallel>], iteration_bounds = array<i64: 1>, scalar_prefetch = 0 : i64, scratch_operands = 0 : i64, tpu.core_type = #tpu.core_type<tc>, window_params = [{transform_indices = @transform_0, window_bounds = array<i64: 8, 32>}, {pipeline_mode = #tpu.pipeline_mode<synchronous>, transform_indices = @transform_1, window_bounds = array<i64: 32, 256>}, {pipeline_mode = #tpu.pipeline_mode<synchronous>, transform_indices = @transform_2, window_bounds = array<i64: 1, 256>}, {pipeline_mode = #tpu.pipeline_mode<synchronous>, transform_indices = @transform_3, window_bounds = array<i64: 128, 256>}, {pipeline_mode = #tpu.pipeline_mode<synchronous>, transform_indices = @transform_4, window_bounds = array<i64: 1, 256>}, {pipeline_mode = #tpu.pipeline_mode<synchronous>, transform_indices = @transform_5, window_bounds = array<i64: 128, 256>}, {pipeline_mode = #tpu.pipeline_mode<synchronous>, transform_indices = @transform_6, window_bounds = array<i64: 1, 256>}, {transform_indices = @transform_7, window_bounds = array<i64: 8, 16>}]} {
    %c0 = arith.constant 0 : index
    %c0_0 = arith.constant 0 : index
    %0 = vector.load %arg1[%c0, %c0_0] : memref<8x32xf32, #tpu.memory_space<vmem>>, vector<8x32xf32>
    %1 = arith.truncf %0 : vector<8x32xf32> to vector<8x32xbf16>
    %c0_1 = arith.constant 0 : index
    %c0_2 = arith.constant 0 : index
    %2 = vector.load %arg2[%c0_1, %c0_2] : memref<32x256xbf16, #tpu.memory_space<vmem>>, vector<32x256xbf16>
    %cst = arith.constant dense<0.000000e+00> : vector<8x256xf32>
    %3 = tpu.matmul %1, %2, %cst {dimension_numbers = #tpu.dot_dimension_numbers<[1], [0], [0], [1], [0, 0, 1, 1], [], []>} : vector<8x32xbf16>, vector<32x256xbf16>, vector<8x256xf32> -> vector<8x256xf32>
    %c0_3 = arith.constant 0 : index
    %c0_4 = arith.constant 0 : index
    %4 = vector.load %arg3[%c0_3, %c0_4] : memref<1x256xf32, #tpu.memory_space<vmem>>, vector<1x256xf32>
    %5 = vector.broadcast %4 : vector<1x256xf32> to vector<8x256xf32>
    %6 = arith.addf %3, %5 : vector<8x256xf32>
    %7 = vector.extract_strided_slice %6 {offsets = [0, 0], sizes = [8, 128], strides = [1, 1]} : vector<8x256xf32> to vector<8x128xf32>
    %8 = arith.negf %7 : vector<8x128xf32>
    %9 = math.exp %8 : vector<8x128xf32>
    %cst_5 = arith.constant 1.000000e+00 : f32
    %10 = vector.broadcast %cst_5 : f32 to vector<8x128xf32>
    %11 = arith.addf %10, %9 : vector<8x128xf32>
    %12 = arith.divf %10, %11 : vector<8x128xf32>
    %13 = vector.extract_strided_slice %6 {offsets = [0, 128], sizes = [8, 128], strides = [1, 1]} : vector<8x256xf32> to vector<8x128xf32>
    %cst_6 = arith.constant 0.000000e+00 : f32
    %14 = vector.broadcast %cst_6 : f32 to vector<8x128xf32>
    %15 = arith.maximumf %13, %14 : vector<8x128xf32>
    %16 = arith.mulf %12, %15 : vector<8x128xf32>
    %17 = arith.truncf %16 : vector<8x128xf32> to vector<8x128xbf16>
    %c0_7 = arith.constant 0 : index
    %c0_8 = arith.constant 0 : index
    %18 = vector.load %arg4[%c0_7, %c0_8] : memref<128x256xbf16, #tpu.memory_space<vmem>>, vector<128x256xbf16>
    %cst_9 = arith.constant dense<0.000000e+00> : vector<8x256xf32>
    %19 = tpu.matmul %17, %18, %cst_9 {dimension_numbers = #tpu.dot_dimension_numbers<[1], [0], [0], [1], [0, 0, 1, 1], [], []>} : vector<8x128xbf16>, vector<128x256xbf16>, vector<8x256xf32> -> vector<8x256xf32>
    %c0_10 = arith.constant 0 : index
    %c0_11 = arith.constant 0 : index
    %20 = vector.load %arg5[%c0_10, %c0_11] : memref<1x256xf32, #tpu.memory_space<vmem>>, vector<1x256xf32>
    %21 = vector.broadcast %20 : vector<1x256xf32> to vector<8x256xf32>
    %22 = arith.addf %19, %21 : vector<8x256xf32>
    %23 = vector.extract_strided_slice %22 {offsets = [0, 0], sizes = [8, 128], strides = [1, 1]} : vector<8x256xf32> to vector<8x128xf32>
    %24 = arith.negf %23 : vector<8x128xf32>
    %25 = math.exp %24 : vector<8x128xf32>
    %cst_12 = arith.constant 1.000000e+00 : f32
    %26 = vector.broadcast %cst_12 : f32 to vector<8x128xf32>
    %27 = arith.addf %26, %25 : vector<8x128xf32>
    %28 = arith.divf %26, %27 : vector<8x128xf32>
    %29 = vector.extract_strided_slice %22 {offsets = [0, 128], sizes = [8, 128], strides = [1, 1]} : vector<8x256xf32> to vector<8x128xf32>
    %cst_13 = arith.constant 0.000000e+00 : f32
    %30 = vector.broadcast %cst_13 : f32 to vector<8x128xf32>
    %31 = arith.maximumf %29, %30 : vector<8x128xf32>
    %32 = arith.mulf %28, %31 : vector<8x128xf32>
    %33 = arith.truncf %32 : vector<8x128xf32> to vector<8x128xbf16>
    %c0_14 = arith.constant 0 : index
    %c0_15 = arith.constant 0 : index
    %34 = vector.load %arg6[%c0_14, %c0_15] : memref<128x256xbf16, #tpu.memory_space<vmem>>, vector<128x256xbf16>
    %cst_16 = arith.constant dense<0.000000e+00> : vector<8x256xf32>
    %35 = tpu.matmul %33, %34, %cst_16 {dimension_numbers = #tpu.dot_dimension_numbers<[1], [0], [0], [1], [0, 0, 1, 1], [], []>} : vector<8x128xbf16>, vector<128x256xbf16>, vector<8x256xf32> -> vector<8x256xf32>
    %c0_17 = arith.constant 0 : index
    %c0_18 = arith.constant 0 : index
    %36 = vector.load %arg7[%c0_17, %c0_18] : memref<1x256xf32, #tpu.memory_space<vmem>>, vector<1x256xf32>
    %37 = vector.broadcast %36 : vector<1x256xf32> to vector<8x256xf32>
    %38 = arith.addf %35, %37 : vector<8x256xf32>
    %39 = vector.extract_strided_slice %38 {offsets = [0, 0], sizes = [8, 128], strides = [1, 1]} : vector<8x256xf32> to vector<8x128xf32>
    %40 = arith.negf %39 : vector<8x128xf32>
    %41 = math.exp %40 : vector<8x128xf32>
    %cst_19 = arith.constant 1.000000e+00 : f32
    %42 = vector.broadcast %cst_19 : f32 to vector<8x128xf32>
    %43 = arith.addf %42, %41 : vector<8x128xf32>
    %44 = arith.divf %42, %43 : vector<8x128xf32>
    %45 = vector.extract_strided_slice %38 {offsets = [0, 128], sizes = [8, 128], strides = [1, 1]} : vector<8x256xf32> to vector<8x128xf32>
    %cst_20 = arith.constant 0.000000e+00 : f32
    %46 = vector.broadcast %cst_20 : f32 to vector<8x128xf32>
    %47 = arith.maximumf %45, %46 : vector<8x128xf32>
    %48 = arith.mulf %44, %47 : vector<8x128xf32>
    %49 = arith.mulf %48, %48 : vector<8x128xf32>
    %cst_21 = arith.constant dense<0.000000e+00> : vector<8xf32>
    %50 = vector.multi_reduction <add>, %49, %cst_21 [1] : vector<8x128xf32> to vector<8xf32>
    %51 = vector.shape_cast %50 : vector<8xf32> to vector<8x1xf32>
    %cst_22 = arith.constant 1.000000e-24 : f32
    %52 = vector.broadcast %cst_22 : f32 to vector<8x1xf32>
    %53 = arith.maximumf %51, %52 : vector<8x1xf32>
    %54 = math.rsqrt %53 : vector<8x1xf32>
    %55 = vector.broadcast %54 : vector<8x1xf32> to vector<8x128xf32>
    %56 = arith.mulf %48, %55 : vector<8x128xf32>
    %57 = vector.extract_strided_slice %56 {offsets = [0, 0], sizes = [8, 16], strides = [1, 1]} : vector<8x128xf32> to vector<8x16xf32>
    %c0_23 = arith.constant 0 : index
    %c0_24 = arith.constant 0 : index
    %58 = vector.load %arg8[%c0_23, %c0_24] : memref<8x16xf32, #tpu.memory_space<vmem>>, vector<8x16xf32>
    tpu.vector_store %arg8[%c0_23, %c0_24], %57 {strides = array<i32>} : memref<8x16xf32, #tpu.memory_space<vmem>>, vector<8x16xf32>,
    return
  }
  func.func @transform_0(%arg0: i32) -> (i32, i32) {
    %c0_i32 = arith.constant 0 : i32
    %c0_i32_0 = arith.constant 0 : i32
    return %arg0, %c0_i32 : i32, i32
  }
  func.func @transform_1(%arg0: i32) -> (i32, i32) {
    %c0_i32 = arith.constant 0 : i32
    %c0_i32_0 = arith.constant 0 : i32
    %c0_i32_1 = arith.constant 0 : i32
    return %c0_i32, %c0_i32_0 : i32, i32
  }
  func.func @transform_2(%arg0: i32) -> (i32, i32) {
    %c0_i32 = arith.constant 0 : i32
    %c0_i32_0 = arith.constant 0 : i32
    %c0_i32_1 = arith.constant 0 : i32
    return %c0_i32, %c0_i32_0 : i32, i32
  }
  func.func @transform_3(%arg0: i32) -> (i32, i32) {
    %c0_i32 = arith.constant 0 : i32
    %c0_i32_0 = arith.constant 0 : i32
    %c0_i32_1 = arith.constant 0 : i32
    return %c0_i32, %c0_i32_0 : i32, i32
  }
  func.func @transform_4(%arg0: i32) -> (i32, i32) {
    %c0_i32 = arith.constant 0 : i32
    %c0_i32_0 = arith.constant 0 : i32
    %c0_i32_1 = arith.constant 0 : i32
    return %c0_i32, %c0_i32_0 : i32, i32
  }
  func.func @transform_5(%arg0: i32) -> (i32, i32) {
    %c0_i32 = arith.constant 0 : i32
    %c0_i32_0 = arith.constant 0 : i32
    %c0_i32_1 = arith.constant 0 : i32
    return %c0_i32, %c0_i32_0 : i32, i32
  }
  func.func @transform_6(%arg0: i32) -> (i32, i32) {
    %c0_i32 = arith.constant 0 : i32
    %c0_i32_0 = arith.constant 0 : i32
    %c0_i32_1 = arith.constant 0 : i32
    return %c0_i32, %c0_i32_0 : i32, i32
  }
  func.func @transform_7(%arg0: i32) -> (i32, i32) {
    %c0_i32 = arith.constant 0 : i32
    %c0_i32_0 = arith.constant 0 : i32
    return %arg0, %c0_i32 : i32, i32
  }
}

module attributes {stable_mosaic.version = 11 : i64} {
  func.func @transform_kernel(%arg0: i32, %arg1: memref<8x32xf32, #tpu.memory_space<vmem>>, %arg2: memref<32x256xbf16, #tpu.memory_space<vmem>>, %arg3: memref<1x256xf32, #tpu.memory_space<vmem>>, %arg4: memref<128x256xbf16, #tpu.memory_space<vmem>>, %arg5: memref<1x256xf32, #tpu.memory_space<vmem>>, %arg6: memref<128x256xbf16, #tpu.memory_space<vmem>>, %arg7: memref<1x256xf32, #tpu.memory_space<vmem>>, %arg8: memref<8x16xf32, #tpu.memory_space<vmem>>) attributes {dimension_semantics = [#tpu.dimension_semantics<parallel>], iteration_bounds = array<i64: 1>, scalar_prefetch = 0 : i64, scratch_operands = 0 : i64, tpu.core_type = #tpu.core_type<tc>, window_params = [{transform_indices = @transform_0, window_bounds = array<i64: 8, 32>}, {pipeline_mode = #tpu.pipeline_mode<synchronous>, transform_indices = @transform_1, window_bounds = array<i64: 32, 256>}, {pipeline_mode = #tpu.pipeline_mode<synchronous>, transform_indices = @transform_2, window_bounds = array<i64: 1, 256>}, {pipeline_mode = #tpu.pipeline_mode<synchronous>, transform_indices = @transform_3, window_bounds = array<i64: 128, 256>}, {pipeline_mode = #tpu.pipeline_mode<synchronous>, transform_indices = @transform_4, window_bounds = array<i64: 1, 256>}, {pipeline_mode = #tpu.pipeline_mode<synchronous>, transform_indices = @transform_5, window_bounds = array<i64: 128, 256>}, {pipeline_mode = #tpu.pipeline_mode<synchronous>, transform_indices = @transform_6, window_bounds = array<i64: 1, 256>}, {transform_indices = @transform_7, window_bounds = array<i64: 8, 16>}]} {
    %c0 = arith.constant 0 : index
    %c0_0 = arith.constant 0 : index
    %0 = vector.load %arg1[%c0, %c0_0] : memref<8x32xf32, #tpu.memory_space<vmem>>, vector<8x32xf32>
    %1 = arith.truncf %0 : vector<8x32xf32> to vector<8x32xbf16>
    %c0_1 = arith.constant 0 : index
    %c0_2 = arith.constant 0 : index
    %2 = vector.load %arg2[%c0_1, %c0_2] : memref<32x256xbf16, #tpu.memory_space<vmem>>, vector<32x256xbf16>
    %cst = arith.constant dense<0.000000e+00> : vector<8x256xf32>
    %3 = tpu.matmul %1, %2, %cst {dimension_numbers = #tpu.dot_dimension_numbers<[1], [0], [0], [1], [0, 0, 1, 1], [], []>} : vector<8x32xbf16>, vector<32x256xbf16>, vector<8x256xf32> -> vector<8x256xf32>
    %c0_3 = arith.constant 0 : index
    %c0_4 = arith.constant 0 : index
    %4 = vector.load %arg3[%c0_3, %c0_4] : memref<1x256xf32, #tpu.memory_space<vmem>>, vector<1x256xf32>
    %5 = vector.broadcast %4 : vector<1x256xf32> to vector<8x256xf32>
    %6 = arith.addf %3, %5 : vector<8x256xf32>
    %7 = vector.extract_strided_slice %6 {offsets = [0, 0], sizes = [8, 128], strides = [1, 1]} : vector<8x256xf32> to vector<8x128xf32>
    %8 = arith.negf %7 : vector<8x128xf32>
    %9 = math.exp %8 : vector<8x128xf32>
    %cst_5 = arith.constant 1.000000e+00 : f32
    %10 = vector.broadcast %cst_5 : f32 to vector<8x128xf32>
    %11 = arith.addf %10, %9 : vector<8x128xf32>
    %12 = arith.divf %10, %11 : vector<8x128xf32>
    %13 = vector.extract_strided_slice %6 {offsets = [0, 128], sizes = [8, 128], strides = [1, 1]} : vector<8x256xf32> to vector<8x128xf32>
    %cst_6 = arith.constant 0.000000e+00 : f32
    %14 = vector.broadcast %cst_6 : f32 to vector<8x128xf32>
    %15 = arith.maximumf %13, %14 : vector<8x128xf32>
    %16 = arith.mulf %12, %15 : vector<8x128xf32>
    %17 = arith.truncf %16 : vector<8x128xf32> to vector<8x128xbf16>
    %c0_7 = arith.constant 0 : index
    %c0_8 = arith.constant 0 : index
    %18 = vector.load %arg4[%c0_7, %c0_8] : memref<128x256xbf16, #tpu.memory_space<vmem>>, vector<128x256xbf16>
    %cst_9 = arith.constant dense<0.000000e+00> : vector<8x256xf32>
    %19 = tpu.matmul %17, %18, %cst_9 {dimension_numbers = #tpu.dot_dimension_numbers<[1], [0], [0], [1], [0, 0, 1, 1], [], []>} : vector<8x128xbf16>, vector<128x256xbf16>, vector<8x256xf32> -> vector<8x256xf32>
    %c0_10 = arith.constant 0 : index
    %c0_11 = arith.constant 0 : index
    %20 = vector.load %arg5[%c0_10, %c0_11] : memref<1x256xf32, #tpu.memory_space<vmem>>, vector<1x256xf32>
    %21 = vector.broadcast %20 : vector<1x256xf32> to vector<8x256xf32>
    %22 = arith.addf %19, %21 : vector<8x256xf32>
    %23 = vector.extract_strided_slice %22 {offsets = [0, 0], sizes = [8, 128], strides = [1, 1]} : vector<8x256xf32> to vector<8x128xf32>
    %24 = arith.negf %23 : vector<8x128xf32>
    %25 = math.exp %24 : vector<8x128xf32>
    %cst_12 = arith.constant 1.000000e+00 : f32
    %26 = vector.broadcast %cst_12 : f32 to vector<8x128xf32>
    %27 = arith.addf %26, %25 : vector<8x128xf32>
    %28 = arith.divf %26, %27 : vector<8x128xf32>
    %29 = vector.extract_strided_slice %22 {offsets = [0, 128], sizes = [8, 128], strides = [1, 1]} : vector<8x256xf32> to vector<8x128xf32>
    %cst_13 = arith.constant 0.000000e+00 : f32
    %30 = vector.broadcast %cst_13 : f32 to vector<8x128xf32>
    %31 = arith.maximumf %29, %30 : vector<8x128xf32>
    %32 = arith.mulf %28, %31 : vector<8x128xf32>
    %33 = arith.truncf %32 : vector<8x128xf32> to vector<8x128xbf16>
    %c0_14 = arith.constant 0 : index
    %c0_15 = arith.constant 0 : index
    %34 = vector.load %arg6[%c0_14, %c0_15] : memref<128x256xbf16, #tpu.memory_space<vmem>>, vector<128x256xbf16>
    %cst_16 = arith.constant dense<0.000000e+00> : vector<8x256xf32>
    %35 = tpu.matmul %33, %34, %cst_16 {dimension_numbers = #tpu.dot_dimension_numbers<[1], [0], [0], [1], [0, 0, 1, 1], [], []>} : vector<8x128xbf16>, vector<128x256xbf16>, vector<8x256xf32> -> vector<8x256xf32>
    %c0_17 = arith.constant 0 : index
    %c0_18 = arith.constant 0 : index
    %36 = vector.load %arg7[%c0_17, %c0_18] : memref<1x256xf32, #tpu.memory_space<vmem>>, vector<1x256xf32>
    %37 = vector.broadcast %36 : vector<1x256xf32> to vector<8x256xf32>
    %38 = arith.addf %35, %37 : vector<8x256xf32>
    %39 = vector.extract_strided_slice %38 {offsets = [0, 0], sizes = [8, 128], strides = [1, 1]} : vector<8x256xf32> to vector<8x128xf32>
    %40 = arith.negf %39 : vector<8x128xf32>
    %41 = math.exp %40 : vector<8x128xf32>
    %cst_19 = arith.constant 1.000000e+00 : f32
    %42 = vector.broadcast %cst_19 : f32 to vector<8x128xf32>
    %43 = arith.addf %42, %41 : vector<8x128xf32>
    %44 = arith.divf %42, %43 : vector<8x128xf32>
    %45 = vector.extract_strided_slice %38 {offsets = [0, 128], sizes = [8, 128], strides = [1, 1]} : vector<8x256xf32> to vector<8x128xf32>
    %cst_20 = arith.constant 0.000000e+00 : f32
    %46 = vector.broadcast %cst_20 : f32 to vector<8x128xf32>
    %47 = arith.maximumf %45, %46 : vector<8x128xf32>
    %48 = arith.mulf %44, %47 : vector<8x128xf32>
    %49 = arith.mulf %48, %48 : vector<8x128xf32>
    %cst_21 = arith.constant dense<0.000000e+00> : vector<8xf32>
    %50 = vector.multi_reduction <add>, %49, %cst_21 [1] : vector<8x128xf32> to vector<8xf32>
    %51 = vector.shape_cast %50 : vector<8xf32> to vector<8x1xf32>
    %cst_22 = arith.constant 1.000000e-24 : f32
    %52 = vector.broadcast %cst_22 : f32 to vector<8x1xf32>
    %53 = arith.maximumf %51, %52 : vector<8x1xf32>
    %54 = math.rsqrt %53 : vector<8x1xf32>
    %55 = vector.broadcast %54 : vector<8x1xf32> to vector<8x128xf32>
    %56 = arith.mulf %48, %55 : vector<8x128xf32>
    %57 = vector.extract_strided_slice %56 {offsets = [0, 0], sizes = [8, 16], strides = [1, 1]} : vector<8x128xf32> to vector<8x16xf32>
    %c0_23 = arith.constant 0 : index
    %c0_24 = arith.constant 0 : index
    %58 = vector.load %arg8[%c0_23, %c0_24] : memref<8x16xf32, #tpu.memory_space<vmem>>, vector<8x16xf32>
    tpu.vector_store %arg8[%c0_23, %c0_24], %57 {strides = array<i32>} : memref<8x16xf32, #tpu.memory_space<vmem>>, vector<8x16xf32>,
    return
  }
  func.func @transform_0(%arg0: i32) -> (i32, i32) {
    %c0_i32 = arith.constant 0 : i32
    %c0_i32_0 = arith.constant 0 : i32
    return %arg0, %c0_i32 : i32, i32
  }
  func.func @transform_1(%arg0: i32) -> (i32, i32) {
    %c0_i32 = arith.constant 0 : i32
    %c0_i32_0 = arith.constant 0 : i32
    %c0_i32_1 = arith.constant 0 : i32
    return %c0_i32, %c0_i32_0 : i32, i32
  }
  func.func @transform_2(%arg0: i32) -> (i32, i32) {
    %c0_i32 = arith.constant 0 : i32
    %c0_i32_0 = arith.constant 0 : i32
    %c0_i32_1 = arith.constant 0 : i32
    return %c0_i32, %c0_i32_0 : i32, i32
  }
  func.func @transform_3(%arg0: i32) -> (i32, i32) {
    %c0_i32 = arith.constant 0 : i32
    %c0_i32_0 = arith.constant 0 : i32
    %c0_i32_1 = arith.constant 0 : i32
    return %c0_i32, %c0_i32_0 : i32, i32
  }
  func.func @transform_4(%arg0: i32) -> (i32, i32) {
    %c0_i32 = arith.constant 0 : i32
    %c0_i32_0 = arith.constant 0 : i32
    %c0_i32_1 = arith.constant 0 : i32
    return %c0_i32, %c0_i32_0 : i32, i32
  }
  func.func @transform_5(%arg0: i32) -> (i32, i32) {
    %c0_i32 = arith.constant 0 : i32
    %c0_i32_0 = arith.constant 0 : i32
    %c0_i32_1 = arith.constant 0 : i32
    return %c0_i32, %c0_i32_0 : i32, i32
  }
  func.func @transform_6(%arg0: i32) -> (i32, i32) {
    %c0_i32 = arith.constant 0 : i32
    %c0_i32_0 = arith.constant 0 : i32
    %c0_i32_1 = arith.constant 0 : i32
    return %c0_i32, %c0_i32_0 : i32, i32
  }
  func.func @transform_7(%arg0: i32) -> (i32, i32) {
    %c0_i32 = arith.constant 0 : i32
    %c0_i32_0 = arith.constant 0 : i32
    return %arg0, %c0_i32 : i32, i32
  }
}

</mosaic_0001>

<llo_original>
// kernel: tpu_custom_call.1
$region0: #{tpu_custom_call.1}
  #allocation0 [shape = 'u32[]', space=smem, size = 0x4, offset = 0x4, fixed_abs, tag = 'smem constant byte address 0x4 - core index']
  #allocation1 [shape = 'u32[144,128]{1,0:T(1,128)}', space=vmem, size = 0x12000, scoped, tag = 'internal scratch']
  %s0 = inlined_call_operand.hbm [shape: f32[8,32], index: 0, kind: input, shape index: {}]
  %s1 = inlined_call_operand.hbm [shape: bf16[32,256], index: 1, kind: input, shape index: {}]
  %s2 = inlined_call_operand.vmem [shape: f32[1,256], index: 2, kind: input, shape index: {}]
  %s3 = inlined_call_operand.hbm [shape: bf16[128,256], index: 3, kind: input, shape index: {}]
  %s4 = inlined_call_operand.vmem [shape: f32[1,256], index: 4, kind: input, shape index: {}]
  %s5 = inlined_call_operand.hbm [shape: bf16[128,256], index: 5, kind: input, shape index: {}]
  %s6 = inlined_call_operand.vmem [shape: f32[1,256], index: 6, kind: input, shape index: {}]
  %s7 = inlined_call_operand.hbm [shape: f32[8,16], index: 7, kind: output, shape index: {}]
  %s8 = sld [smem:[#allocation0]]
  $region54: #{tpu_custom_call.1} parent=0
    _
  %s10 = ssub.s32 1, %s8
  %s11 = scalar_select 0, %s10, %s8
  $region1: #{tpu_custom_call.1} parent=0
    #allocation2 [shape = 'u8[4096]{0}', space=vmem, size = 0x1000, scoped, tag = 'input window, operand 0, single buffered']
    #allocation3 [shape = 's32[1]{0}', space=sflag, size = 0x4, scoped, tag = 'scoped memory for tpu_custom_call.1']
    #allocation4 [shape = 's32[1]{0}', space=sflag, size = 0x4, scoped, tag = 'scoped memory for tpu_custom_call.1']
    #allocation5 [shape = 'u8[16384]{0}', space=vmem, size = 0x4000, scoped, tag = 'input window, operand 1, single buffered']
    #allocation6 [shape = 's32[1]{0}', space=sflag, size = 0x4, scoped, tag = 'scoped memory for tpu_custom_call.1']
    #allocation7 [shape = 'u8[65536]{0}', space=vmem, size = 0x10000, scoped, tag = 'input window, operand 3, single buffered']
    #allocation8 [shape = 'u8[65536]{0}', space=vmem, size = 0x10000, scoped, tag = 'input window, operand 5, single buffered']
    #allocation9 [shape = 's32[1]{0}', space=sflag, size = 0x4, scoped, tag = 'scoped memory for tpu_custom_call.1']
    #allocation10 [shape = 'u8[4096]{0}', space=vmem, size = 0x1000, scoped, tag = 'output window, operand 0, single buffered']
    %12 = vsyncpa [#allocation3], 0
    %13 = vsyncpa [#allocation6], 0
    %14 = vsyncpa [#allocation9], 0
    %15 = vsyncpa [#allocation4], 0
    // Predicated region
    $region2: #{tpu_custom_call.1} parent=1 // pred_check
      _
    $region3: #{tpu_custom_call.1} parent=1 // pred_check_branch
      %17 = sbr.rel (0) target = $region5
    $region4: #{tpu_custom_call.1} parent=1 // pred_region
      %s19 = ssub.s32 128, 128
      %20 = vsyncadd [#allocation3], %s19
      %s22 = sshll.u32 [#allocation2], 4
      %s23 = int_to_ptr.vmem [resolvable:$true] %s22
      %25 = dma.hbm_to_vmem [thread:$0]  %s0, 128, %s23, [#allocation3]
    $region5: #{tpu_custom_call.1} parent=1 // pred_fallthru
      _
    // Predicated region
    $region6: #{tpu_custom_call.1} parent=1 // pred_check
      _
    $region7: #{tpu_custom_call.1} parent=1 // pred_check_branch
      %27 = sbr.rel (0) target = $region9
    $region8: #{tpu_custom_call.1} parent=1 // pred_region
      %s29 = ssub.s32 512, 512
      %30 = vsyncadd [#allocation6], %s29
      %s31 = sshll.u32 [#allocation5], 4
      %s32 = int_to_ptr.vmem [resolvable:$true] %s31
      %37 = dma.hbm_to_vmem [thread:$0]  %s1, 512, %s32, [#allocation6], 128, 128, 8
    $region9: #{tpu_custom_call.1} parent=1 // pred_fallthru
      _
    // Predicated region
    $region10: #{tpu_custom_call.1} parent=1 // pred_check
      _
    $region11: #{tpu_custom_call.1} parent=1 // pred_check_branch
      %39 = sbr.rel (0) target = $region13
    $region12: #{tpu_custom_call.1} parent=1 // pred_region
      _
    $region13: #{tpu_custom_call.1} parent=1 // pred_fallthru
      _
    // Predicated region
    $region14: #{tpu_custom_call.1} parent=1 // pred_check
      _
    $region15: #{tpu_custom_call.1} parent=1 // pred_check_branch
      %41 = sbr.rel (0) target = $region17
    $region16: #{tpu_custom_call.1} parent=1 // pred_region
      %s43 = ssub.s32 2048, 2048
      %44 = vsyncadd [#allocation6], %s43
      %s45 = sshll.u32 [#allocation7], 4
      %s46 = int_to_ptr.vmem [resolvable:$true] %s45
      %51 = dma.hbm_to_vmem [thread:$0]  %s3, 2048, %s46, [#allocation6], 128, 128, 8
    $region17: #{tpu_custom_call.1} parent=1 // pred_fallthru
      _
    // Predicated region
    $region18: #{tpu_custom_call.1} parent=1 // pred_check
      _
    $region19: #{tpu_custom_call.1} parent=1 // pred_check_branch
      %53 = sbr.rel (0) target = $region21
    $region20: #{tpu_custom_call.1} parent=1 // pred_region
      _
    $region21: #{tpu_custom_call.1} parent=1 // pred_fallthru
      _
    // Predicated region
    $region22: #{tpu_custom_call.1} parent=1 // pred_check
      _
    $region23: #{tpu_custom_call.1} parent=1 // pred_check_branch
      %55 = sbr.rel (0) target = $region25
    $region24: #{tpu_custom_call.1} parent=1 // pred_region
      %s57 = ssub.s32 2048, 2048
      %58 = vsyncadd [#allocation9], %s57
      %s59 = sshll.u32 [#allocation8], 4
      %s60 = int_to_ptr.vmem [resolvable:$true] %s59
      %65 = dma.hbm_to_vmem [thread:$0]  %s5, 2048, %s60, [#allocation9], 128, 128, 8
    $region25: #{tpu_custom_call.1} parent=1 // pred_fallthru
      _
    // Predicated region
    $region26: #{tpu_custom_call.1} parent=1 // pred_check
      _
    $region27: #{tpu_custom_call.1} parent=1 // pred_check_branch
      %67 = sbr.rel (0) target = $region29
    $region28: #{tpu_custom_call.1} parent=1 // pred_region
      _
    $region29: #{tpu_custom_call.1} parent=1 // pred_fallthru
      _
    // Predicated region
    $region30: #{tpu_custom_call.1} parent=1 // pred_check
      _
    $region31: #{tpu_custom_call.1} parent=1 // pred_check_branch
      %69 = sbr.rel (0) target = $region33
    $region32: #{tpu_custom_call.1} parent=1 // pred_region
      %70 = dma.done [#allocation3], 128
    $region33: #{tpu_custom_call.1} parent=1 // pred_fallthru
      _
    // Predicated region
    $region34: #{tpu_custom_call.1} parent=1 // pred_check
      _
    $region35: #{tpu_custom_call.1} parent=1 // pred_check_branch
      %72 = sbr.rel (0) target = $region37
    $region36: #{tpu_custom_call.1} parent=1 // pred_region
      %73 = dma.done [#allocation6], 512
    $region37: #{tpu_custom_call.1} parent=1 // pred_fallthru
      _
    // Predicated region
    $region38: #{tpu_custom_call.1} parent=1 // pred_check
      _
    $region39: #{tpu_custom_call.1} parent=1 // pred_check_branch
      %75 = sbr.rel (0) target = $region41
    $region40: #{tpu_custom_call.1} parent=1 // pred_region
      %76 = dma.done [#allocation6], 2048
    $region41: #{tpu_custom_call.1} parent=1 // pred_fallthru
      _
    // Predicated region
    $region42: #{tpu_custom_call.1} parent=1 // pred_check
      _
    $region43: #{tpu_custom_call.1} parent=1 // pred_check_branch
      %78 = sbr.rel (0) target = $region45
    $region44: #{tpu_custom_call.1} parent=1 // pred_region
      %79 = dma.done [#allocation9], 2048
    $region45: #{tpu_custom_call.1} parent=1 // pred_fallthru
      _
    %v81 = vld [vmem:[#allocation2] sm:$0xff]
    %v82 = vpack.c.bf16 %v81, %v81
    %v83 = vld [vmem:[#allocation5] sm:$0xff]
    %v84 = vld [vmem:[#allocation5 + $0x8] sm:$0xff]
    %v85 = vld [vmem:[#allocation5 + $0x10] sm:$0xff]
    %v86 = vld [vmem:[#allocation5 + $0x18] sm:$0xff]
    %v87 = vld [vmem:[%s2] sm:$0x3]
    %v89 = vlaneseq
    %v90 = vshrl.u32 %v89, 7
    %v91 = vsub.s32 0, %v90
    %v92 = vrot.slane %v87, %v91
    %v93 = vlaneseq
    %v94 = vshrl.u32 %v93, 7
    %v95 = vsub.s32 1, %v94
    %v96 = vrot.slane %v87, %v95
    %v103 = vunpack.c.l.b16 %v83
    %v104 = vunpack.c.h.b16 %v83
    %v105 = vunpack.c.l.b16 %v84
    %v106 = vunpack.c.h.b16 %v84
    %v107 = vunpack.c.l.b16 %v85
    %v108 = vunpack.c.h.b16 %v85
    %v109 = vunpack.c.l.b16 %v86
    %v110 = vunpack.c.h.b16 %v86
    %v111 = vpack.c.b16 %v105, %v103
    %v112 = vpack.c.b16 %v106, %v104
    %v113 = vpack.c.b16 %v109, %v107
    %v114 = vpack.c.b16 %v110, %v108
    %vm119 = vcmask 261120
    %v121 = vsel %vm119, %v82, 0
    %123 = vmatprep.subr.bf16.mxu0 0
    %124 = vmatpush1.bf16.msra.mxu0 0
    %125 = vmatprep.subr.bf16.mxu0 0
    %126 = vmatpush1.bf16.msra.mxu0 0
    %127 = vmatprep.subr.bf16.mxu0 0
    %128 = vmatpush1.bf16.msra.mxu0 0
    %129 = vmatprep.subr.bf16.mxu0 0
    %130 = vmatpush1.bf16.msra.mxu0 0
    %131 = vmatprep.subr.bf16.mxu0 0
    %132 = vmatpush1.bf16.msra.mxu0 0
    %133 = vmatprep.subr.bf16.mxu0 0
    %134 = vmatpush1.bf16.msra.mxu0 0
    %135 = vmatprep.subr.bf16.mxu0 %v114
    %136 = vmatpush1.bf16.msra.mxu0 %v113
    %137 = vmatprep.subr.bf16.mxu0 %v112
    %138 = vmatpush1.bf16.msra.mxu0 %v111
    %139 = vmatprep.subr.bf16.mxu0 0
    %140 = vmatpush2.bf16.msra.mxu0 0
    %141 = vmatprep.subr.bf16.mxu0 0
    %142 = vmatpush2.bf16.msra.mxu0 0
    %143 = vmatprep.subr.bf16.mxu0 0
    %144 = vmatpush2.bf16.msra.mxu0 0
    %145 = vmatprep.subr.bf16.mxu0 0
    %146 = vmatpush2.bf16.msra.mxu0 0
    %147 = vmatprep.subr.bf16.mxu0 0
    %148 = vmatpush2.bf16.msra.mxu0 0
    %149 = vmatprep.subr.bf16.mxu0 0
    %150 = vmatpush2.bf16.msra.mxu0 0
    %151 = vmatprep.subr.bf16.mxu0 0
    %152 = vmatpush2.bf16.msra.mxu0 0
    %153 = vmatprep.subr.bf16.mxu0 0
    %154 = vmatpush2.bf16.msra.mxu0 0
    %155 = vmatprep.mubr.bf16.mxu0 0
    %156 = vmatmul.mubr.bf16.gmra.mxu0 %v121
    %v157 = vpop.f32.mrf.mxu0
    %v158 = vadd.f32 %v92, %v157
    %v159 = vpop.f32.mrf.mxu0
    %v160 = vadd.f32 %v96, %v159
    %v161 = vpop.f32.mrf.mxu0
    %v162 = vpop.f32.mrf.mxu0
    %163 = vdwg.mxu0
    %v164 = vxor.u32 %v158, 2147483648
    %v165 = vmul.f32 %v164, 1.442695
    %v166 = vpow.pop %v165
    %v167 = vadd.f32 %v166, 1.0
    %v168 = vrcp.pop %v167
    %v169 = vmul.f32 1.0, %v168
    %v170 = vmax.f32 %v160, 0.0
    %v171 = vmul.f32 %v169, %v170
    %v172 = vpack.c.bf16 %v171, %v171
    %v173 = vld [vmem:[#allocation7] sm:$0xff]
    %v174 = vld [vmem:[#allocation7 + $0x8] sm:$0xff]
    %v175 = vld [vmem:[#allocation7 + $0x10] sm:$0xff]
    %v176 = vld [vmem:[#allocation7 + $0x18] sm:$0xff]
    %v177 = vld [vmem:[#allocation7 + $0x20] sm:$0xff]
    %v178 = vld [vmem:[#allocation7 + $0x28] sm:$0xff]
    %v179 = vld [vmem:[#allocation7 + $0x30] sm:$0xff]
    %v180 = vld [vmem:[#allocation7 + $0x38] sm:$0xff]
    %v181 = vld [vmem:[#allocation7 + $0x40] sm:$0xff]
    %v182 = vld [vmem:[#allocation7 + $0x48] sm:$0xff]
    %v183 = vld [vmem:[#allocation7 + $0x50] sm:$0xff]
    %v184 = vld [vmem:[#allocation7 + $0x58] sm:$0xff]
    %v185 = vld [vmem:[#allocation7 + $0x60] sm:$0xff]
    %v186 = vld [vmem:[#allocation7 + $0x68] sm:$0xff]
    %v187 = vld [vmem:[#allocation7 + $0x70] sm:$0xff]
    %v188 = vld [vmem:[#allocation7 + $0x78] sm:$0xff]
    %v189 = vld [vmem:[%s4] sm:$0x3]
    %v191 = vlaneseq
    %v192 = vshrl.u32 %v191, 7
    %v193 = vsub.s32 0, %v192
    %v194 = vrot.slane %v189, %v193
    %v195 = vlaneseq
    %v196 = vshrl.u32 %v195, 7
    %v197 = vsub.s32 1, %v196
    %v198 = vrot.slane %v189, %v197
    %v217 = vunpack.c.l.b16 %v173
    %v218 = vunpack.c.h.b16 %v173
    %v219 = vunpack.c.l.b16 %v174
    %v220 = vunpack.c.h.b16 %v174
    %v221 = vunpack.c.l.b16 %v175
    %v222 = vunpack.c.h.b16 %v175
    %v223 = vunpack.c.l.b16 %v176
    %v224 = vunpack.c.h.b16 %v176
    %v225 = vunpack.c.l.b16 %v177
    %v226 = vunpack.c.h.b16 %v177
    %v227 = vunpack.c.l.b16 %v178
    %v228 = vunpack.c.h.b16 %v178
    %v229 = vunpack.c.l.b16 %v179
    %v230 = vunpack.c.h.b16 %v179
    %v231 = vunpack.c.l.b16 %v180
    %v232 = vunpack.c.h.b16 %v180
    %v233 = vunpack.c.l.b16 %v181
    %v234 = vunpack.c.h.b16 %v181
    %v235 = vunpack.c.l.b16 %v182
    %v236 = vunpack.c.h.b16 %v182
    %v237 = vunpack.c.l.b16 %v183
    %v238 = vunpack.c.h.b16 %v183
    %v239 = vunpack.c.l.b16 %v184
    %v240 = vunpack.c.h.b16 %v184
    %v241 = vunpack.c.l.b16 %v185
    %v242 = vunpack.c.h.b16 %v185
    %v243 = vunpack.c.l.b16 %v186
    %v244 = vunpack.c.h.b16 %v186
    %v245 = vunpack.c.l.b16 %v187
    %v246 = vunpack.c.h.b16 %v187
    %v247 = vunpack.c.l.b16 %v188
    %v248 = vunpack.c.h.b16 %v188
    %v249 = vpack.c.b16 %v219, %v217
    %v250 = vpack.c.b16 %v220, %v218
    %v251 = vpack.c.b16 %v223, %v221
    %v252 = vpack.c.b16 %v224, %v222
    %v253 = vpack.c.b16 %v227, %v225
    %v254 = vpack.c.b16 %v228, %v226
    %v255 = vpack.c.b16 %v231, %v229
    %v256 = vpack.c.b16 %v232, %v230
    %v257 = vpack.c.b16 %v235, %v233
    %v258 = vpack.c.b16 %v236, %v234
    %v259 = vpack.c.b16 %v239, %v237
    %v260 = vpack.c.b16 %v240, %v238
    %v261 = vpack.c.b16 %v243, %v241
    %v262 = vpack.c.b16 %v244, %v242
    %v263 = vpack.c.b16 %v247, %v245
    %v264 = vpack.c.b16 %v248, %v246
    %281 = vmatprep.subr.bf16.mxu0 %v264
    %282 = vmatpush1.bf16.msra.mxu0 %v263
    %283 = vmatprep.subr.bf16.mxu0 %v262
    %284 = vmatpush1.bf16.msra.mxu0 %v261
    %285 = vmatprep.subr.bf16.mxu0 %v260
    %286 = vmatpush1.bf16.msra.mxu0 %v259
    %287 = vmatprep.subr.bf16.mxu0 %v258
    %288 = vmatpush1.bf16.msra.mxu0 %v257
    %289 = vmatprep.subr.bf16.mxu0 %v256
    %290 = vmatpush1.bf16.msra.mxu0 %v255
    %291 = vmatprep.subr.bf16.mxu0 %v254
    %292 = vmatpush1.bf16.msra.mxu0 %v253
    %293 = vmatprep.subr.bf16.mxu0 %v252
    %294 = vmatpush1.bf16.msra.mxu0 %v251
    %295 = vmatprep.subr.bf16.mxu0 %v250
    %296 = vmatpush1.bf16.msra.mxu0 %v249
    %297 = vmatprep.subr.bf16.mxu0 0
    %298 = vmatpush2.bf16.msra.mxu0 0
    %299 = vmatprep.subr.bf16.mxu0 0
    %300 = vmatpush2.bf16.msra.mxu0 0
    %301 = vmatprep.subr.bf16.mxu0 0
    %302 = vmatpush2.bf16.msra.mxu0 0
    %303 = vmatprep.subr.bf16.mxu0 0
    %304 = vmatpush2.bf16.msra.mxu0 0
    %305 = vmatprep.subr.bf16.mxu0 0
    %306 = vmatpush2.bf16.msra.mxu0 0
    %307 = vmatprep.subr.bf16.mxu0 0
    %308 = vmatpush2.bf16.msra.mxu0 0
    %309 = vmatprep.subr.bf16.mxu0 0
    %310 = vmatpush2.bf16.msra.mxu0 0
    %311 = vmatprep.subr.bf16.mxu0 0
    %312 = vmatpush2.bf16.msra.mxu0 0
    %313 = vmatprep.mubr.bf16.mxu0 0
    %314 = vmatmul.mubr.bf16.gmra.mxu0 %v172
    %v315 = vpop.f32.mrf.mxu0
    %v316 = vadd.f32 %v194, %v315
    %v317 = vpop.f32.mrf.mxu0
    %v318 = vadd.f32 %v198, %v317
    %v319 = vpop.f32.mrf.mxu0
    %v320 = vpop.f32.mrf.mxu0
    %321 = vdwg.mxu0
    %v322 = vxor.u32 %v316, 2147483648
    %v323 = vmul.f32 %v322, 1.442695
    %v324 = vpow.pop %v323
    %v325 = vadd.f32 %v324, 1.0
    %v326 = vrcp.pop %v325
    %v327 = vmul.f32 1.0, %v326
    %v328 = vmax.f32 %v318, 0.0
    %v329 = vmul.f32 %v327, %v328
    %v330 = vpack.c.bf16 %v329, %v329
    %v331 = vld [vmem:[#allocation8] sm:$0xff]
    %v332 = vld [vmem:[#allocation8 + $0x8] sm:$0xff]
    %v333 = vld [vmem:[#allocation8 + $0x10] sm:$0xff]
    %v334 = vld [vmem:[#allocation8 + $0x18] sm:$0xff]
    %v335 = vld [vmem:[#allocation8 + $0x20] sm:$0xff]
    %v336 = vld [vmem:[#allocation8 + $0x28] sm:$0xff]
    %v337 = vld [vmem:[#allocation8 + $0x30] sm:$0xff]
    %v338 = vld [vmem:[#allocation8 + $0x38] sm:$0xff]
    %v339 = vld [vmem:[#allocation8 + $0x40] sm:$0xff]
    %v340 = vld [vmem:[#allocation8 + $0x48] sm:$0xff]
    %v341 = vld [vmem:[#allocation8 + $0x50] sm:$0xff]
    %v342 = vld [vmem:[#allocation8 + $0x58] sm:$0xff]
    %v343 = vld [vmem:[#allocation8 + $0x60] sm:$0xff]
    %v344 = vld [vmem:[#allocation8 + $0x68] sm:$0xff]
    %v345 = vld [vmem:[#allocation8 + $0x70] sm:$0xff]
    %v346 = vld [vmem:[#allocation8 + $0x78] sm:$0xff]
    %v347 = vld [vmem:[%s6] sm:$0x3]
    %v349 = vlaneseq
    %v350 = vshrl.u32 %v349, 7
    %v351 = vsub.s32 0, %v350
    %v352 = vrot.slane %v347, %v351
    %v353 = vlaneseq
    %v354 = vshrl.u32 %v353, 7
    %v355 = vsub.s32 1, %v354
    %v356 = vrot.slane %v347, %v355
    %v375 = vunpack.c.l.b16 %v331
    %v376 = vunpack.c.h.b16 %v331
    %v377 = vunpack.c.l.b16 %v332
    %v378 = vunpack.c.h.b16 %v332
    %v379 = vunpack.c.l.b16 %v333
    %v380 = vunpack.c.h.b16 %v333
    %v381 = vunpack.c.l.b16 %v334
    %v382 = vunpack.c.h.b16 %v334
    %v383 = vunpack.c.l.b16 %v335
    %v384 = vunpack.c.h.b16 %v335
    %v385 = vunpack.c.l.b16 %v336
    %v386 = vunpack.c.h.b16 %v336
    %v387 = vunpack.c.l.b16 %v337
    %v388 = vunpack.c.h.b16 %v337
    %v389 = vunpack.c.l.b16 %v338
    %v390 = vunpack.c.h.b16 %v338
    %v391 = vunpack.c.l.b16 %v339
    %v392 = vunpack.c.h.b16 %v339
    %v393 = vunpack.c.l.b16 %v340
    %v394 = vunpack.c.h.b16 %v340
    %v395 = vunpack.c.l.b16 %v341
    %v396 = vunpack.c.h.b16 %v341
    %v397 = vunpack.c.l.b16 %v342
    %v398 = vunpack.c.h.b16 %v342
    %v399 = vunpack.c.l.b16 %v343
    %v400 = vunpack.c.h.b16 %v343
    %v401 = vunpack.c.l.b16 %v344
    %v402 = vunpack.c.h.b16 %v344
    %v403 = vunpack.c.l.b16 %v345
    %v404 = vunpack.c.h.b16 %v345
    %v405 = vunpack.c.l.b16 %v346
    %v406 = vunpack.c.h.b16 %v346
    %v407 = vpack.c.b16 %v377, %v375
    %v408 = vpack.c.b16 %v378, %v376
    %v409 = vpack.c.b16 %v381, %v379
    %v410 = vpack.c.b16 %v382, %v380
    %v411 = vpack.c.b16 %v385, %v383
    %v412 = vpack.c.b16 %v386, %v384
    %v413 = vpack.c.b16 %v389, %v387
    %v414 = vpack.c.b16 %v390, %v388
    %v415 = vpack.c.b16 %v393, %v391
    %v416 = vpack.c.b16 %v394, %v392
    %v417 = vpack.c.b16 %v397, %v395
    %v418 = vpack.c.b16 %v398, %v396
    %v419 = vpack.c.b16 %v401, %v399
    %v420 = vpack.c.b16 %v402, %v400
    %v421 = vpack.c.b16 %v405, %v403
    %v422 = vpack.c.b16 %v406, %v404
    %439 = vmatprep.subr.bf16.mxu0 %v422
    %440 = vmatpush1.bf16.msra.mxu0 %v421
    %441 = vmatprep.subr.bf16.mxu0 %v420
    %442 = vmatpush1.bf16.msra.mxu0 %v419
    %443 = vmatprep.subr.bf16.mxu0 %v418
    %444 = vmatpush1.bf16.msra.mxu0 %v417
    %445 = vmatprep.subr.bf16.mxu0 %v416
    %446 = vmatpush1.bf16.msra.mxu0 %v415
    %447 = vmatprep.subr.bf16.mxu0 %v414
    %448 = vmatpush1.bf16.msra.mxu0 %v413
    %449 = vmatprep.subr.bf16.mxu0 %v412
    %450 = vmatpush1.bf16.msra.mxu0 %v411
    %451 = vmatprep.subr.bf16.mxu0 %v410
    %452 = vmatpush1.bf16.msra.mxu0 %v409
    %453 = vmatprep.subr.bf16.mxu0 %v408
    %454 = vmatpush1.bf16.msra.mxu0 %v407
    %455 = vmatprep.subr.bf16.mxu0 0
    %456 = vmatpush2.bf16.msra.mxu0 0
    %457 = vmatprep.subr.bf16.mxu0 0
    %458 = vmatpush2.bf16.msra.mxu0 0
    %459 = vmatprep.subr.bf16.mxu0 0
    %460 = vmatpush2.bf16.msra.mxu0 0
    %461 = vmatprep.subr.bf16.mxu0 0
    %462 = vmatpush2.bf16.msra.mxu0 0
    %463 = vmatprep.subr.bf16.mxu0 0
    %464 = vmatpush2.bf16.msra.mxu0 0
    %465 = vmatprep.subr.bf16.mxu0 0
    %466 = vmatpush2.bf16.msra.mxu0 0
    %467 = vmatprep.subr.bf16.mxu0 0
    %468 = vmatpush2.bf16.msra.mxu0 0
    %469 = vmatprep.subr.bf16.mxu0 0
    %470 = vmatpush2.bf16.msra.mxu0 0
    %471 = vmatprep.mubr.bf16.mxu0 0
    %472 = vmatmul.mubr.bf16.gmra.mxu0 %v330
    %v473 = vpop.f32.mrf.mxu0
    %v474 = vadd.f32 %v352, %v473
    %v475 = vpop.f32.mrf.mxu0
    %v476 = vadd.f32 %v356, %v475
    %v477 = vpop.f32.mrf.mxu0
    %v478 = vpop.f32.mrf.mxu0
    %479 = vdwg.mxu0
    %v480 = vxor.u32 %v474, 2147483648
    %v481 = vmul.f32 %v480, 1.442695
    %v482 = vpow.pop %v481
    %v483 = vadd.f32 %v482, 1.0
    %v484 = vrcp.pop %v483
    %v485 = vmul.f32 1.0, %v484
    %v486 = vmax.f32 %v476, 0.0
    %v487 = vmul.f32 %v485, %v486
    %v488 = vmul.f32 %v487, %v487
    %489 = vadd.xlane.f32.xlu0 %v488
    %v490 = vpop.xlane.xlu0 %489
    %v491 = vmax.f32 %v490, 1e-24
    %v492 = vrsqrt.pop %v491
    %v493 = vmul.f32 %v487, %v492
    %vm494 = vcmask 130048
    %495 = vst.msk [vmem:[#allocation10] sm:$0xff] %vm494, %v493
    // Predicated region
    $region46: #{tpu_custom_call.1} parent=1 // pred_check
      _
    $region47: #{tpu_custom_call.1} parent=1 // pred_check_branch
      %497 = sbr.rel (0) target = $region49
    $region48: #{tpu_custom_call.1} parent=1 // pred_region
      %s499 = ssub.s32 128, 128
      %500 = vsyncadd [#allocation4], %s499
      %s502 = sshll.u32 [#allocation10], 4
      %s503 = int_to_ptr.vmem [resolvable:$true] %s502
      %505 = dma.vmem_to_hbm [thread:$0]  %s503, 128, %s7, [#allocation4]
    $region49: #{tpu_custom_call.1} parent=1 // pred_fallthru
      _
    // Predicated region
    $region50: #{tpu_custom_call.1} parent=1 // pred_check
      _
    $region51: #{tpu_custom_call.1} parent=1 // pred_check_branch
      %507 = sbr.rel (0) target = $region53
    $region52: #{tpu_custom_call.1} parent=1 // pred_region
      %508 = dma.done [#allocation4], 128
    $region53: #{tpu_custom_call.1} parent=1 // pred_fallthru
      _
    %509 = vsyncpa [#allocation3], 1
    %510 = vsyncpa [#allocation6], 1
    %511 = vsyncpa [#allocation9], 1
    %512 = vsyncpa [#allocation4], 1

// kernel: tpu_custom_call.1
$region0: #{tpu_custom_call.1}
  #allocation0 [shape = 'u32[]', space=smem, size = 0x4, offset = 0x4, fixed_abs, tag = 'smem constant byte address 0x4 - core index']
  #allocation1 [shape = 'u32[144,128]{1,0:T(1,128)}', space=vmem, size = 0x12000, scoped, tag = 'internal scratch']
  %s0 = inlined_call_operand.hbm [shape: f32[8,32], index: 0, kind: input, shape index: {}]
  %s1 = inlined_call_operand.hbm [shape: bf16[32,256], index: 1, kind: input, shape index: {}]
  %s2 = inlined_call_operand.vmem [shape: f32[1,256], index: 2, kind: input, shape index: {}]
  %s3 = inlined_call_operand.hbm [shape: bf16[128,256], index: 3, kind: input, shape index: {}]
  %s4 = inlined_call_operand.vmem [shape: f32[1,256], index: 4, kind: input, shape index: {}]
  %s5 = inlined_call_operand.hbm [shape: bf16[128,256], index: 5, kind: input, shape index: {}]
  %s6 = inlined_call_operand.vmem [shape: f32[1,256], index: 6, kind: input, shape index: {}]
  %s7 = inlined_call_operand.hbm [shape: f32[8,16], index: 7, kind: output, shape index: {}]
  %s8 = sld [smem:[#allocation0]]
  $region54: #{tpu_custom_call.1} parent=0
    _
  %s10 = ssub.s32 1, %s8
  %s11 = scalar_select 0, %s10, %s8
  $region1: #{tpu_custom_call.1} parent=0
    #allocation2 [shape = 'u8[4096]{0}', space=vmem, size = 0x1000, scoped, tag = 'input window, operand 0, single buffered']
    #allocation3 [shape = 's32[1]{0}', space=sflag, size = 0x4, scoped, tag = 'scoped memory for tpu_custom_call.1']
    #allocation4 [shape = 's32[1]{0}', space=sflag, size = 0x4, scoped, tag = 'scoped memory for tpu_custom_call.1']
    #allocation5 [shape = 'u8[16384]{0}', space=vmem, size = 0x4000, scoped, tag = 'input window, operand 1, single buffered']
    #allocation6 [shape = 's32[1]{0}', space=sflag, size = 0x4, scoped, tag = 'scoped memory for tpu_custom_call.1']
    #allocation7 [shape = 'u8[65536]{0}', space=vmem, size = 0x10000, scoped, tag = 'input window, operand 3, single buffered']
    #allocation8 [shape = 'u8[65536]{0}', space=vmem, size = 0x10000, scoped, tag = 'input window, operand 5, single buffered']
    #allocation9 [shape = 's32[1]{0}', space=sflag, size = 0x4, scoped, tag = 'scoped memory for tpu_custom_call.1']
    #allocation10 [shape = 'u8[4096]{0}', space=vmem, size = 0x1000, scoped, tag = 'output window, operand 0, single buffered']
    %12 = vsyncpa [#allocation3], 0
    %13 = vsyncpa [#allocation6], 0
    %14 = vsyncpa [#allocation9], 0
    %15 = vsyncpa [#allocation4], 0
    // Predicated region
    $region2: #{tpu_custom_call.1} parent=1 // pred_check
      _
    $region3: #{tpu_custom_call.1} parent=1 // pred_check_branch
      %17 = sbr.rel (0) target = $region5
    $region4: #{tpu_custom_call.1} parent=1 // pred_region
      %s19 = ssub.s32 128, 128
      %20 = vsyncadd [#allocation3], %s19
      %s22 = sshll.u32 [#allocation2], 4
      %s23 = int_to_ptr.vmem [resolvable:$true] %s22
      %25 = dma.hbm_to_vmem [thread:$0]  %s0, 128, %s23, [#allocation3]
    $region5: #{tpu_custom_call.1} parent=1 // pred_fallthru
      _
    // Predicated region
    $region6: #{tpu_custom_call.1} parent=1 // pred_check
      _
    $region7: #{tpu_custom_call.1} parent=1 // pred_check_branch
      %27 = sbr.rel (0) target = $region9
    $region8: #{tpu_custom_call.1} parent=1 // pred_region
      %s29 = ssub.s32 512, 512
      %30 = vsyncadd [#allocation6], %s29
      %s31 = sshll.u32 [#allocation5], 4
      %s32 = int_to_ptr.vmem [resolvable:$true] %s31
      %37 = dma.hbm_to_vmem [thread:$0]  %s1, 512, %s32, [#allocation6], 128, 128, 8
    $region9: #{tpu_custom_call.1} parent=1 // pred_fallthru
      _
    // Predicated region
    $region10: #{tpu_custom_call.1} parent=1 // pred_check
      _
    $region11: #{tpu_custom_call.1} parent=1 // pred_check_branch
      %39 = sbr.rel (0) target = $region13
    $region12: #{tpu_custom_call.1} parent=1 // pred_region
      _
    $region13: #{tpu_custom_call.1} parent=1 // pred_fallthru
      _
    // Predicated region
    $region14: #{tpu_custom_call.1} parent=1 // pred_check
      _
    $region15: #{tpu_custom_call.1} parent=1 // pred_check_branch
      %41 = sbr.rel (0) target = $region17
    $region16: #{tpu_custom_call.1} parent=1 // pred_region
      %s43 = ssub.s32 2048, 2048
      %44 = vsyncadd [#allocation6], %s43
      %s45 = sshll.u32 [#allocation7], 4
      %s46 = int_to_ptr.vmem [resolvable:$true] %s45
      %51 = dma.hbm_to_vmem [thread:$0]  %s3, 2048, %s46, [#allocation6], 128, 128, 8
    $region17: #{tpu_custom_call.1} parent=1 // pred_fallthru
      _
    // Predicated region
    $region18: #{tpu_custom_call.1} parent=1 // pred_check
      _
    $region19: #{tpu_custom_call.1} parent=1 // pred_check_branch
      %53 = sbr.rel (0) target = $region21
    $region20: #{tpu_custom_call.1} parent=1 // pred_region
      _
    $region21: #{tpu_custom_call.1} parent=1 // pred_fallthru
      _
    // Predicated region
    $region22: #{tpu_custom_call.1} parent=1 // pred_check
      _
    $region23: #{tpu_custom_call.1} parent=1 // pred_check_branch
      %55 = sbr.rel (0) target = $region25
    $region24: #{tpu_custom_call.1} parent=1 // pred_region
      %s57 = ssub.s32 2048, 2048
      %58 = vsyncadd [#allocation9], %s57
      %s59 = sshll.u32 [#allocation8], 4
      %s60 = int_to_ptr.vmem [resolvable:$true] %s59
      %65 = dma.hbm_to_vmem [thread:$0]  %s5, 2048, %s60, [#allocation9], 128, 128, 8
    $region25: #{tpu_custom_call.1} parent=1 // pred_fallthru
      _
    // Predicated region
    $region26: #{tpu_custom_call.1} parent=1 // pred_check
      _
    $region27: #{tpu_custom_call.1} parent=1 // pred_check_branch
      %67 = sbr.rel (0) target = $region29
    $region28: #{tpu_custom_call.1} parent=1 // pred_region
      _
    $region29: #{tpu_custom_call.1} parent=1 // pred_fallthru
      _
    // Predicated region
    $region30: #{tpu_custom_call.1} parent=1 // pred_check
      _
    $region31: #{tpu_custom_call.1} parent=1 // pred_check_branch
      %69 = sbr.rel (0) target = $region33
    $region32: #{tpu_custom_call.1} parent=1 // pred_region
      %70 = dma.done [#allocation3], 128
    $region33: #{tpu_custom_call.1} parent=1 // pred_fallthru
      _
    // Predicated region
    $region34: #{tpu_custom_call.1} parent=1 // pred_check
      _
    $region35: #{tpu_custom_call.1} parent=1 // pred_check_branch
      %72 = sbr.rel (0) target = $region37
    $region36: #{tpu_custom_call.1} parent=1 // pred_region
      %73 = dma.done [#allocation6], 512
    $region37: #{tpu_custom_call.1} parent=1 // pred_fallthru
      _
    // Predicated region
    $region38: #{tpu_custom_call.1} parent=1 // pred_check
      _
    $region39: #{tpu_custom_call.1} parent=1 // pred_check_branch
      %75 = sbr.rel (0) target = $region41
    $region40: #{tpu_custom_call.1} parent=1 // pred_region
      %76 = dma.done [#allocation6], 2048
    $region41: #{tpu_custom_call.1} parent=1 // pred_fallthru
      _
    // Predicated region
    $region42: #{tpu_custom_call.1} parent=1 // pred_check
      _
    $region43: #{tpu_custom_call.1} parent=1 // pred_check_branch
      %78 = sbr.rel (0) target = $region45
    $region44: #{tpu_custom_call.1} parent=1 // pred_region
      %79 = dma.done [#allocation9], 2048
    $region45: #{tpu_custom_call.1} parent=1 // pred_fallthru
      _
    %v81 = vld [vmem:[#allocation2] sm:$0xff]
    %v82 = vpack.c.bf16 %v81, %v81
    %v83 = vld [vmem:[#allocation5] sm:$0xff]
    %v84 = vld [vmem:[#allocation5 + $0x8] sm:$0xff]
    %v85 = vld [vmem:[#allocation5 + $0x10] sm:$0xff]
    %v86 = vld [vmem:[#allocation5 + $0x18] sm:$0xff]
    %v87 = vld [vmem:[%s2] sm:$0x3]
    %v89 = vlaneseq
    %v90 = vshrl.u32 %v89, 7
    %v91 = vsub.s32 0, %v90
    %v92 = vrot.slane %v87, %v91
    %v93 = vlaneseq
    %v94 = vshrl.u32 %v93, 7
    %v95 = vsub.s32 1, %v94
    %v96 = vrot.slane %v87, %v95
    %v103 = vunpack.c.l.b16 %v83
    %v104 = vunpack.c.h.b16 %v83
    %v105 = vunpack.c.l.b16 %v84
    %v106 = vunpack.c.h.b16 %v84
    %v107 = vunpack.c.l.b16 %v85
    %v108 = vunpack.c.h.b16 %v85
    %v109 = vunpack.c.l.b16 %v86
    %v110 = vunpack.c.h.b16 %v86
    %v111 = vpack.c.b16 %v105, %v103
    %v112 = vpack.c.b16 %v106, %v104
    %v113 = vpack.c.b16 %v109, %v107
    %v114 = vpack.c.b16 %v110, %v108
    %vm119 = vcmask 261120
    %v121 = vsel %vm119, %v82, 0
    %123 = vmatprep.subr.bf16.mxu0 0
    %124 = vmatpush1.bf16.msra.mxu0 0
    %125 = vmatprep.subr.bf16.mxu0 0
    %126 = vmatpush1.bf16.msra.mxu0 0
    %127 = vmatprep.subr.bf16.mxu0 0
    %128 = vmatpush1.bf16.msra.mxu0 0
    %129 = vmatprep.subr.bf16.mxu0 0
    %130 = vmatpush1.bf16.msra.mxu0 0
    %131 = vmatprep.subr.bf16.mxu0 0
    %132 = vmatpush1.bf16.msra.mxu0 0
    %133 = vmatprep.subr.bf16.mxu0 0
    %134 = vmatpush1.bf16.msra.mxu0 0
    %135 = vmatprep.subr.bf16.mxu0 %v114
    %136 = vmatpush1.bf16.msra.mxu0 %v113
    %137 = vmatprep.subr.bf16.mxu0 %v112
    %138 = vmatpush1.bf16.msra.mxu0 %v111
    %139 = vmatprep.subr.bf16.mxu0 0
    %140 = vmatpush2.bf16.msra.mxu0 0
    %141 = vmatprep.subr.bf16.mxu0 0
    %142 = vmatpush2.bf16.msra.mxu0 0
    %143 = vmatprep.subr.bf16.mxu0 0
    %144 = vmatpush2.bf16.msra.mxu0 0
    %145 = vmatprep.subr.bf16.mxu0 0
    %146 = vmatpush2.bf16.msra.mxu0 0
    %147 = vmatprep.subr.bf16.mxu0 0
    %148 = vmatpush2.bf16.msra.mxu0 0
    %149 = vmatprep.subr.bf16.mxu0 0
    %150 = vmatpush2.bf16.msra.mxu0 0
    %151 = vmatprep.subr.bf16.mxu0 0
    %152 = vmatpush2.bf16.msra.mxu0 0
    %153 = vmatprep.subr.bf16.mxu0 0
    %154 = vmatpush2.bf16.msra.mxu0 0
    %155 = vmatprep.mubr.bf16.mxu0 0
    %156 = vmatmul.mubr.bf16.gmra.mxu0 %v121
    %v157 = vpop.f32.mrf.mxu0
    %v158 = vadd.f32 %v92, %v157
    %v159 = vpop.f32.mrf.mxu0
    %v160 = vadd.f32 %v96, %v159
    %v161 = vpop.f32.mrf.mxu0
    %v162 = vpop.f32.mrf.mxu0
    %163 = vdwg.mxu0
    %v164 = vxor.u32 %v158, 2147483648
    %v165 = vmul.f32 %v164, 1.442695
    %v166 = vpow.pop %v165
    %v167 = vadd.f32 %v166, 1.0
    %v168 = vrcp.pop %v167
    %v169 = vmul.f32 1.0, %v168
    %v170 = vmax.f32 %v160, 0.0
    %v171 = vmul.f32 %v169, %v170
    %v172 = vpack.c.bf16 %v171, %v171
    %v173 = vld [vmem:[#allocation7] sm:$0xff]
    %v174 = vld [vmem:[#allocation7 + $0x8] sm:$0xff]
    %v175 = vld [vmem:[#allocation7 + $0x10] sm:$0xff]
    %v176 = vld [vmem:[#allocation7 + $0x18] sm:$0xff]
    %v177 = vld [vmem:[#allocation7 + $0x20] sm:$0xff]
    %v178 = vld [vmem:[#allocation7 + $0x28] sm:$0xff]
    %v179 = vld [vmem:[#allocation7 + $0x30] sm:$0xff]
    %v180 = vld [vmem:[#allocation7 + $0x38] sm:$0xff]
    %v181 = vld [vmem:[#allocation7 + $0x40] sm:$0xff]
    %v182 = vld [vmem:[#allocation7 + $0x48] sm:$0xff]
    %v183 = vld [vmem:[#allocation7 + $0x50] sm:$0xff]
    %v184 = vld [vmem:[#allocation7 + $0x58] sm:$0xff]
    %v185 = vld [vmem:[#allocation7 + $0x60] sm:$0xff]
    %v186 = vld [vmem:[#allocation7 + $0x68] sm:$0xff]
    %v187 = vld [vmem:[#allocation7 + $0x70] sm:$0xff]
    %v188 = vld [vmem:[#allocation7 + $0x78] sm:$0xff]
    %v189 = vld [vmem:[%s4] sm:$0x3]
    %v191 = vlaneseq
    %v192 = vshrl.u32 %v191, 7
    %v193 = vsub.s32 0, %v192
    %v194 = vrot.slane %v189, %v193
    %v195 = vlaneseq
    %v196 = vshrl.u32 %v195, 7
    %v197 = vsub.s32 1, %v196
    %v198 = vrot.slane %v189, %v197
    %v217 = vunpack.c.l.b16 %v173
    %v218 = vunpack.c.h.b16 %v173
    %v219 = vunpack.c.l.b16 %v174
    %v220 = vunpack.c.h.b16 %v174
    %v221 = vunpack.c.l.b16 %v175
    %v222 = vunpack.c.h.b16 %v175
    %v223 = vunpack.c.l.b16 %v176
    %v224 = vunpack.c.h.b16 %v176
    %v225 = vunpack.c.l.b16 %v177
    %v226 = vunpack.c.h.b16 %v177
    %v227 = vunpack.c.l.b16 %v178
    %v228 = vunpack.c.h.b16 %v178
    %v229 = vunpack.c.l.b16 %v179
    %v230 = vunpack.c.h.b16 %v179
    %v231 = vunpack.c.l.b16 %v180
    %v232 = vunpack.c.h.b16 %v180
    %v233 = vunpack.c.l.b16 %v181
    %v234 = vunpack.c.h.b16 %v181
    %v235 = vunpack.c.l.b16 %v182
    %v236 = vunpack.c.h.b16 %v182
    %v237 = vunpack.c.l.b16 %v183
    %v238 = vunpack.c.h.b16 %v183
    %v239 = vunpack.c.l.b16 %v184
    %v240 = vunpack.c.h.b16 %v184
    %v241 = vunpack.c.l.b16 %v185
    %v242 = vunpack.c.h.b16 %v185
    %v243 = vunpack.c.l.b16 %v186
    %v244 = vunpack.c.h.b16 %v186
    %v245 = vunpack.c.l.b16 %v187
    %v246 = vunpack.c.h.b16 %v187
    %v247 = vunpack.c.l.b16 %v188
    %v248 = vunpack.c.h.b16 %v188
    %v249 = vpack.c.b16 %v219, %v217
    %v250 = vpack.c.b16 %v220, %v218
    %v251 = vpack.c.b16 %v223, %v221
    %v252 = vpack.c.b16 %v224, %v222
    %v253 = vpack.c.b16 %v227, %v225
    %v254 = vpack.c.b16 %v228, %v226
    %v255 = vpack.c.b16 %v231, %v229
    %v256 = vpack.c.b16 %v232, %v230
    %v257 = vpack.c.b16 %v235, %v233
    %v258 = vpack.c.b16 %v236, %v234
    %v259 = vpack.c.b16 %v239, %v237
    %v260 = vpack.c.b16 %v240, %v238
    %v261 = vpack.c.b16 %v243, %v241
    %v262 = vpack.c.b16 %v244, %v242
    %v263 = vpack.c.b16 %v247, %v245
    %v264 = vpack.c.b16 %v248, %v246
    %281 = vmatprep.subr.bf16.mxu0 %v264
    %282 = vmatpush1.bf16.msra.mxu0 %v263
    %283 = vmatprep.subr.bf16.mxu0 %v262
    %284 = vmatpush1.bf16.msra.mxu0 %v261
    %285 = vmatprep.subr.bf16.mxu0 %v260
    %286 = vmatpush1.bf16.msra.mxu0 %v259
    %287 = vmatprep.subr.bf16.mxu0 %v258
    %288 = vmatpush1.bf16.msra.mxu0 %v257
    %289 = vmatprep.subr.bf16.mxu0 %v256
    %290 = vmatpush1.bf16.msra.mxu0 %v255
    %291 = vmatprep.subr.bf16.mxu0 %v254
    %292 = vmatpush1.bf16.msra.mxu0 %v253
    %293 = vmatprep.subr.bf16.mxu0 %v252
    %294 = vmatpush1.bf16.msra.mxu0 %v251
    %295 = vmatprep.subr.bf16.mxu0 %v250
    %296 = vmatpush1.bf16.msra.mxu0 %v249
    %297 = vmatprep.subr.bf16.mxu0 0
    %298 = vmatpush2.bf16.msra.mxu0 0
    %299 = vmatprep.subr.bf16.mxu0 0
    %300 = vmatpush2.bf16.msra.mxu0 0
    %301 = vmatprep.subr.bf16.mxu0 0
    %302 = vmatpush2.bf16.msra.mxu0 0
    %303 = vmatprep.subr.bf16.mxu0 0
    %304 = vmatpush2.bf16.msra.mxu0 0
    %305 = vmatprep.subr.bf16.mxu0 0
    %306 = vmatpush2.bf16.msra.mxu0 0
    %307 = vmatprep.subr.bf16.mxu0 0
    %308 = vmatpush2.bf16.msra.mxu0 0
    %309 = vmatprep.subr.bf16.mxu0 0
    %310 = vmatpush2.bf16.msra.mxu0 0
    %311 = vmatprep.subr.bf16.mxu0 0
    %312 = vmatpush2.bf16.msra.mxu0 0
    %313 = vmatprep.mubr.bf16.mxu0 0
    %314 = vmatmul.mubr.bf16.gmra.mxu0 %v172
    %v315 = vpop.f32.mrf.mxu0
    %v316 = vadd.f32 %v194, %v315
    %v317 = vpop.f32.mrf.mxu0
    %v318 = vadd.f32 %v198, %v317
    %v319 = vpop.f32.mrf.mxu0
    %v320 = vpop.f32.mrf.mxu0
    %321 = vdwg.mxu0
    %v322 = vxor.u32 %v316, 2147483648
    %v323 = vmul.f32 %v322, 1.442695
    %v324 = vpow.pop %v323
    %v325 = vadd.f32 %v324, 1.0
    %v326 = vrcp.pop %v325
    %v327 = vmul.f32 1.0, %v326
    %v328 = vmax.f32 %v318, 0.0
    %v329 = vmul.f32 %v327, %v328
    %v330 = vpack.c.bf16 %v329, %v329
    %v331 = vld [vmem:[#allocation8] sm:$0xff]
    %v332 = vld [vmem:[#allocation8 + $0x8] sm:$0xff]
    %v333 = vld [vmem:[#allocation8 + $0x10] sm:$0xff]
    %v334 = vld [vmem:[#allocation8 + $0x18] sm:$0xff]
    %v335 = vld [vmem:[#allocation8 + $0x20] sm:$0xff]
    %v336 = vld [vmem:[#allocation8 + $0x28] sm:$0xff]
    %v337 = vld [vmem:[#allocation8 + $0x30] sm:$0xff]
    %v338 = vld [vmem:[#allocation8 + $0x38] sm:$0xff]
    %v339 = vld [vmem:[#allocation8 + $0x40] sm:$0xff]
    %v340 = vld [vmem:[#allocation8 + $0x48] sm:$0xff]
    %v341 = vld [vmem:[#allocation8 + $0x50] sm:$0xff]
    %v342 = vld [vmem:[#allocation8 + $0x58] sm:$0xff]
    %v343 = vld [vmem:[#allocation8 + $0x60] sm:$0xff]
    %v344 = vld [vmem:[#allocation8 + $0x68] sm:$0xff]
    %v345 = vld [vmem:[#allocation8 + $0x70] sm:$0xff]
    %v346 = vld [vmem:[#allocation8 + $0x78] sm:$0xff]
    %v347 = vld [vmem:[%s6] sm:$0x3]
    %v349 = vlaneseq
    %v350 = vshrl.u32 %v349, 7
    %v351 = vsub.s32 0, %v350
    %v352 = vrot.slane %v347, %v351
    %v353 = vlaneseq
    %v354 = vshrl.u32 %v353, 7
    %v355 = vsub.s32 1, %v354
    %v356 = vrot.slane %v347, %v355
    %v375 = vunpack.c.l.b16 %v331
    %v376 = vunpack.c.h.b16 %v331
    %v377 = vunpack.c.l.b16 %v332
    %v378 = vunpack.c.h.b16 %v332
    %v379 = vunpack.c.l.b16 %v333
    %v380 = vunpack.c.h.b16 %v333
    %v381 = vunpack.c.l.b16 %v334
    %v382 = vunpack.c.h.b16 %v334
    %v383 = vunpack.c.l.b16 %v335
    %v384 = vunpack.c.h.b16 %v335
    %v385 = vunpack.c.l.b16 %v336
    %v386 = vunpack.c.h.b16 %v336
    %v387 = vunpack.c.l.b16 %v337
    %v388 = vunpack.c.h.b16 %v337
    %v389 = vunpack.c.l.b16 %v338
    %v390 = vunpack.c.h.b16 %v338
    %v391 = vunpack.c.l.b16 %v339
    %v392 = vunpack.c.h.b16 %v339
    %v393 = vunpack.c.l.b16 %v340
    %v394 = vunpack.c.h.b16 %v340
    %v395 = vunpack.c.l.b16 %v341
    %v396 = vunpack.c.h.b16 %v341
    %v397 = vunpack.c.l.b16 %v342
    %v398 = vunpack.c.h.b16 %v342
    %v399 = vunpack.c.l.b16 %v343
    %v400 = vunpack.c.h.b16 %v343
    %v401 = vunpack.c.l.b16 %v344
    %v402 = vunpack.c.h.b16 %v344
    %v403 = vunpack.c.l.b16 %v345
    %v404 = vunpack.c.h.b16 %v345
    %v405 = vunpack.c.l.b16 %v346
    %v406 = vunpack.c.h.b16 %v346
    %v407 = vpack.c.b16 %v377, %v375
    %v408 = vpack.c.b16 %v378, %v376
    %v409 = vpack.c.b16 %v381, %v379
    %v410 = vpack.c.b16 %v382, %v380
    %v411 = vpack.c.b16 %v385, %v383
    %v412 = vpack.c.b16 %v386, %v384
    %v413 = vpack.c.b16 %v389, %v387
    %v414 = vpack.c.b16 %v390, %v388
    %v415 = vpack.c.b16 %v393, %v391
    %v416 = vpack.c.b16 %v394, %v392
    %v417 = vpack.c.b16 %v397, %v395
    %v418 = vpack.c.b16 %v398, %v396
    %v419 = vpack.c.b16 %v401, %v399
    %v420 = vpack.c.b16 %v402, %v400
    %v421 = vpack.c.b16 %v405, %v403
    %v422 = vpack.c.b16 %v406, %v404
    %439 = vmatprep.subr.bf16.mxu0 %v422
    %440 = vmatpush1.bf16.msra.mxu0 %v421
    %441 = vmatprep.subr.bf16.mxu0 %v420
    %442 = vmatpush1.bf16.msra.mxu0 %v419
    %443 = vmatprep.subr.bf16.mxu0 %v418
    %444 = vmatpush1.bf16.msra.mxu0 %v417
    %445 = vmatprep.subr.bf16.mxu0 %v416
    %446 = vmatpush1.bf16.msra.mxu0 %v415
    %447 = vmatprep.subr.bf16.mxu0 %v414
    %448 = vmatpush1.bf16.msra.mxu0 %v413
    %449 = vmatprep.subr.bf16.mxu0 %v412
    %450 = vmatpush1.bf16.msra.mxu0 %v411
    %451 = vmatprep.subr.bf16.mxu0 %v410
    %452 = vmatpush1.bf16.msra.mxu0 %v409
    %453 = vmatprep.subr.bf16.mxu0 %v408
    %454 = vmatpush1.bf16.msra.mxu0 %v407
    %455 = vmatprep.subr.bf16.mxu0 0
    %456 = vmatpush2.bf16.msra.mxu0 0
    %457 = vmatprep.subr.bf16.mxu0 0
    %458 = vmatpush2.bf16.msra.mxu0 0
    %459 = vmatprep.subr.bf16.mxu0 0
    %460 = vmatpush2.bf16.msra.mxu0 0
    %461 = vmatprep.subr.bf16.mxu0 0
    %462 = vmatpush2.bf16.msra.mxu0 0
    %463 = vmatprep.subr.bf16.mxu0 0
    %464 = vmatpush2.bf16.msra.mxu0 0
    %465 = vmatprep.subr.bf16.mxu0 0
    %466 = vmatpush2.bf16.msra.mxu0 0
    %467 = vmatprep.subr.bf16.mxu0 0
    %468 = vmatpush2.bf16.msra.mxu0 0
    %469 = vmatprep.subr.bf16.mxu0 0
    %470 = vmatpush2.bf16.msra.mxu0 0
    %471 = vmatprep.mubr.bf16.mxu0 0
    %472 = vmatmul.mubr.bf16.gmra.mxu0 %v330
    %v473 = vpop.f32.mrf.mxu0
    %v474 = vadd.f32 %v352, %v473
    %v475 = vpop.f32.mrf.mxu0
    %v476 = vadd.f32 %v356, %v475
    %v477 = vpop.f32.mrf.mxu0
    %v478 = vpop.f32.mrf.mxu0
    %479 = vdwg.mxu0
    %v480 = vxor.u32 %v474, 2147483648
    %v481 = vmul.f32 %v480, 1.442695
    %v482 = vpow.pop %v481
    %v483 = vadd.f32 %v482, 1.0
    %v484 = vrcp.pop %v483
    %v485 = vmul.f32 1.0, %v484
    %v486 = vmax.f32 %v476, 0.0
    %v487 = vmul.f32 %v485, %v486
    %v488 = vmul.f32 %v487, %v487
    %489 = vadd.xlane.f32.xlu0 %v488
    %v490 = vpop.xlane.xlu0 %489
    %v491 = vmax.f32 %v490, 1e-24
    %v492 = vrsqrt.pop %v491
    %v493 = vmul.f32 %v487, %v492
    %vm494 = vcmask 130048
    %495 = vst.msk [vmem:[#allocation10] sm:$0xff] %vm494, %v493
    // Predicated region
    $region46: #{tpu_custom_call.1} parent=1 // pred_check
      _
    $region47: #{tpu_custom_call.1} parent=1 // pred_check_branch
      %497 = sbr.rel (0) target = $region49
    $region48: #{tpu_custom_call.1} parent=1 // pred_region
      %s499 = ssub.s32 128, 128
      %500 = vsyncadd [#allocation4], %s499
      %s502 = sshll.u32 [#allocation10], 4
      %s503 = int_to_ptr.vmem [resolvable:$true] %s502
      %505 = dma.vmem_to_hbm [thread:$0]  %s503, 128, %s7, [#allocation4]
    $region49: #{tpu_custom_call.1} parent=1 // pred_fallthru
      _
    // Predicated region
    $region50: #{tpu_custom_call.1} parent=1 // pred_check
      _
    $region51: #{tpu_custom_call.1} parent=1 // pred_check_branch
      %507 = sbr.rel (0) target = $region53
    $region52: #{tpu_custom_call.1} parent=1 // pred_region
      %508 = dma.done [#allocation4], 128
    $region53: #{tpu_custom_call.1} parent=1 // pred_fallthru
      _
    %509 = vsyncpa [#allocation3], 1
    %510 = vsyncpa [#allocation6], 1
    %511 = vsyncpa [#allocation9], 1
    %512 = vsyncpa [#allocation4], 1

</llo_original>
